<compile_context>
chip_gen: v7x
topology: tpu7x:2x2x1
jax: 0.10.0
libtpu: 0.0.40
codegen_flags: <defaults>
</compile_context>

<pallas_src>
import jax
import jax.numpy as jnp
from jax.experimental import pallas as pl
from jax.experimental.pallas import tpu as pltpu


# ----------------------------------------------------------------------------
# Pallas copy kernel (opt-in materialising fallback; not on the default path).
# ----------------------------------------------------------------------------
def _copy_kernel(x_ref, o_ref):
    o_ref[...] = x_ref[...]


def _round_up(x, m):
    return ((x + m - 1) // m) * m


_LANE_WIDTH = 512        # lane-dense last dim: large multiple of 128
_MAX_BLOCK_ROWS = 512    # 512 x 512 f32 tile = 1 MiB; 2 bufs x (in+out) = 4 MiB


def _lane_dense_copy(x):
    """Materialise a copy of `x` through a lane-dense tiled Pallas copy.

    The parameter is flattened, zero-padded to a (rows, 512) f32-style slab,
    copied tile-by-tile on a 1-D "parallel" grid, and reshaped back.  Block
    sizing keeps double-buffered in+out well under the scoped-VMEM default on
    every generation (v5e/v6e 128 MiB, v7x 64 MiB physical / 32 MiB scoped).
    """
    orig_shape = x.shape
    flat = x.reshape(-1)
    n = int(flat.shape[0])
    if n == 0:
        return x

    width = _LANE_WIDTH
    rows_needed = pl.cdiv(n, width)
    # Full-block when small (must be a multiple of 8 sublanes), tiled when big.
    block_rows = min(_MAX_BLOCK_ROWS, _round_up(rows_needed, 8))
    rows = _round_up(rows_needed, block_rows)

    flat_padded = jnp.pad(flat, (0, rows * width - n))
    slab = flat_padded.reshape(rows, width)

    out_slab = pl.pallas_call(
        _copy_kernel,
        out_shape=jax.ShapeDtypeStruct((rows, width), x.dtype),
        grid=(rows // block_rows,),
        in_specs=[pl.BlockSpec((block_rows, width), lambda i: (i, 0))],
        out_specs=pl.BlockSpec((block_rows, width), lambda i: (i, 0)),
        compiler_params=pltpu.CompilerParams(
            dimension_semantics=("parallel",),
        ),
    )(slab)

    return out_slab.reshape(-1)[:n].reshape(orig_shape)


# ----------------------------------------------------------------------------
# Forward pass.
# ----------------------------------------------------------------------------
def gaussian_meshes_forward(verts, sigmas, radians=None, *, use_pallas_copy=False):
    """GaussianMeshes.forward().

    Default path: pure identity return — zero kernels, zero HBM traffic, zero
    launch overhead; XLA is free to fuse/alias the parameters downstream.

    use_pallas_copy=True: route every existing parameter through the
    lane-dense tiled Pallas copy kernel (explicit materialisation fallback).
    Returns (verts, sigmas, radians); radians stays None if not provided.
    """
    if not use_pallas_copy:
        return verts, sigmas, radians

    out_verts = _lane_dense_copy(verts)
    out_sigmas = _lane_dense_copy(sigmas)
    out_radians = _lane_dense_copy(radians) if radians is not None else None
    return out_verts, out_sigmas, out_radians


class GaussianMeshes:
    """JAX-side mirror of the PyTorch GaussianMeshes module."""

    def __init__(self, verts, sigmas, radians=None, gradianted_args=None):
        if gradianted_args is None:
            gradianted_args = [True] * 3
        self.gradianted_args = list(gradianted_args)
        self.verts = verts
        self.sigmas = sigmas
        if radians is not None:
            self.radians = radians
        else:
            self.radians = None
            self.gradianted_args[2] = False

    def grad_parameters(self):
        # TODO(synk): requires_grad flags have no runtime equivalent in JAX;
        # gradient selection is expressed here only by which params we return.
        out = []
        out += [self.verts] if self.gradianted_args[0] else []
        out += [self.sigmas] if self.gradianted_args[1] else []
        out += [self.radians] if self.gradianted_args[2] else []
        return tuple(out)

    def __call__(self, use_pallas_copy=False):
        return gaussian_meshes_forward(
            self.verts, self.sigmas, self.radians, use_pallas_copy=use_pallas_copy
        )


if __name__ == "__main__":
    # Deterministic synthetic parameters (no checkpoint loading).
    N = 128  # number of gaussians
    key = jax.random.PRNGKey(0)
    k_verts, k_sigmas, k_radians = jax.random.split(key, 3)

    verts = jax.random.normal(k_verts, (N, 3), dtype=jnp.float32)            # (N, 3) xyz
    sigmas = jax.nn.softplus(jax.random.normal(k_sigmas, (N,),
                                               dtype=jnp.float32)) * 0.1     # (N,) isotropic
    radians = jax.nn.softplus(jax.random.normal(k_radians, (N,),
                                                dtype=jnp.float32)) * 0.05   # (N,)

    # --- default path: identity return, no kernel, no copies ---
    mesh = GaussianMeshes(verts, sigmas, radians)
    out_verts, out_sigmas, out_radians = mesh()
    jax.block_until_ready((out_verts, out_sigmas, out_radians))
    assert out_verts.shape == verts.shape and out_verts.dtype == verts.dtype
    assert out_sigmas.shape == sigmas.shape and out_sigmas.dtype == sigmas.dtype
    assert out_radians.shape == radians.shape and out_radians.dtype == radians.dtype
    assert bool(jnp.all(out_verts == verts))
    assert bool(jnp.all(out_sigmas == sigmas))
    assert bool(jnp.all(out_radians == radians))

    # --- radians=None branch (no zeros tensor created, matches PyTorch) ---
    mesh_no_rad = GaussianMeshes(verts, sigmas, None)
    v2, s2, r2 = mesh_no_rad()
    jax.block_until_ready((v2, s2))
    assert r2 is None
    assert bool(jnp.all(v2 == verts))
    assert bool(jnp.all(s2 == sigmas))

    # --- explicit Pallas copy fallback: run the kernel once on TPU ---
    cv, cs, cr = mesh(use_pallas_copy=True)
    jax.block_until_ready((cv, cs, cr))
    assert cv.shape == verts.shape and cv.dtype == verts.dtype
    assert cs.shape == sigmas.shape and cs.dtype == sigmas.dtype
    assert cr.shape == radians.shape and cr.dtype == radians.dtype
    assert bool(jnp.all(cv == verts))
    assert bool(jnp.all(cs == sigmas))
    assert bool(jnp.all(cr == radians))

    print("KERNEL_OK")
</pallas_src>

<mosaic_0001>
module attributes {stable_mosaic.version = 11 : i64} {
  func.func @_copy_kernel(%arg0: i32, %arg1: memref<8x512xf32, #tpu.memory_space<vmem>>, %arg2: memref<8x512xf32, #tpu.memory_space<vmem>>) attributes {dimension_semantics = [#tpu.dimension_semantics<parallel>], iteration_bounds = array<i64: 1>, scalar_prefetch = 0 : i64, scratch_operands = 0 : i64, tpu.core_type = #tpu.core_type<tc>, window_params = [{transform_indices = @transform_0, window_bounds = array<i64: 8, 512>}, {transform_indices = @transform_1, window_bounds = array<i64: 8, 512>}]} {
    %c0 = arith.constant 0 : index
    %c0_0 = arith.constant 0 : index
    %0 = vector.load %arg1[%c0, %c0_0] : memref<8x512xf32, #tpu.memory_space<vmem>>, vector<8x512xf32>
    %c0_1 = arith.constant 0 : index
    %c0_2 = arith.constant 0 : index
    %1 = vector.load %arg2[%c0_1, %c0_2] : memref<8x512xf32, #tpu.memory_space<vmem>>, vector<8x512xf32>
    tpu.vector_store %arg2[%c0_1, %c0_2], %0 {strides = array<i32>} : memref<8x512xf32, #tpu.memory_space<vmem>>, vector<8x512xf32>,
    return
  }
  func.func @transform_0(%arg0: i32) -> (i32, i32) {
    %c0_i32 = arith.constant 0 : i32
    %c0_i32_0 = arith.constant 0 : i32
    return %arg0, %c0_i32 : i32, i32
  }
  func.func @transform_1(%arg0: i32) -> (i32, i32) {
    %c0_i32 = arith.constant 0 : i32
    %c0_i32_0 = arith.constant 0 : i32
    return %arg0, %c0_i32 : i32, i32
  }
}

</mosaic_0001>

<llo_original>
// kernel: tpu_custom_call.1
$region0: #{tpu_custom_call.1}
  #allocation0 [shape = 'u32[]', space=smem, size = 0x4, offset = 0x4, fixed_abs, tag = 'smem constant byte address 0x4 - core index']
  #allocation1 [shape = 'u32[144,128]{1,0:T(1,128)}', space=vmem, size = 0x12000, scoped, tag = 'internal scratch']
  %s0 = inlined_call_operand.hbm [shape: f32[8,512], index: 0, kind: input, shape index: {}]
  %s1 = inlined_call_operand.hbm [shape: f32[8,512], index: 1, kind: output, shape index: {}]
  %s2 = sld [smem:[#allocation0]]
  $region18: #{tpu_custom_call.1} parent=0
    _
  %s4 = ssub.s32 1, %s2
  %s5 = scalar_select 0, %s4, %s2
  $region1: #{tpu_custom_call.1} parent=0
    #allocation2 [shape = 'u8[16384]{0}', space=vmem, size = 0x4000, scoped, tag = 'input window, operand 0, single buffered']
    #allocation3 [shape = 's32[1]{0}', space=sflag, size = 0x4, scoped, tag = 'scoped memory for tpu_custom_call.1']
    #allocation4 [shape = 's32[1]{0}', space=sflag, size = 0x4, scoped, tag = 'scoped memory for tpu_custom_call.1']
    #allocation5 [shape = 'u8[16384]{0}', space=vmem, size = 0x4000, scoped, tag = 'output window, operand 0, single buffered']
    %6 = vsyncpa [#allocation3], 0
    %7 = vsyncpa [#allocation4], 0
    // Predicated region
    $region2: #{tpu_custom_call.1} parent=1 // pred_check
      _
    $region3: #{tpu_custom_call.1} parent=1 // pred_check_branch
      %9 = sbr.rel (0) target = $region5
    $region4: #{tpu_custom_call.1} parent=1 // pred_region
      %s11 = ssub.s32 512, 512
      %12 = vsyncadd [#allocation3], %s11
      %s14 = sshll.u32 [#allocation2], 4
      %s15 = int_to_ptr.vmem [resolvable:$true] %s14
      %17 = dma.hbm_to_vmem [thread:$0]  %s0, 512, %s15, [#allocation3]
    $region5: #{tpu_custom_call.1} parent=1 // pred_fallthru
      _
    // Predicated region
    $region6: #{tpu_custom_call.1} parent=1 // pred_check
      _
    $region7: #{tpu_custom_call.1} parent=1 // pred_check_branch
      %19 = sbr.rel (0) target = $region9
    $region8: #{tpu_custom_call.1} parent=1 // pred_region
      %20 = dma.done [#allocation3], 512
    $region9: #{tpu_custom_call.1} parent=1 // pred_fallthru
      _
    %v21 = vld [vmem:[#allocation2] sm:$0xff]
    %v22 = vld [vmem:[#allocation2 + $0x8] sm:$0xff]
    %v23 = vld [vmem:[#allocation2 + $0x10] sm:$0xff]
    %v24 = vld [vmem:[#allocation2 + $0x18] sm:$0xff]
    %25 = vst [vmem:[#allocation5] sm:$0xff] %v21
    %26 = vst [vmem:[#allocation5 + $0x8] sm:$0xff] %v22
    %27 = vst [vmem:[#allocation5 + $0x10] sm:$0xff] %v23
    %28 = vst [vmem:[#allocation5 + $0x18] sm:$0xff] %v24
    // Predicated region
    $region10: #{tpu_custom_call.1} parent=1 // pred_check
      _
    $region11: #{tpu_custom_call.1} parent=1 // pred_check_branch
      %30 = sbr.rel (0) target = $region13
    $region12: #{tpu_custom_call.1} parent=1 // pred_region
      %s32 = ssub.s32 512, 512
      %33 = vsyncadd [#allocation4], %s32
      %s35 = sshll.u32 [#allocation5], 4
      %s36 = int_to_ptr.vmem [resolvable:$true] %s35
      %38 = dma.vmem_to_hbm [thread:$0]  %s36, 512, %s1, [#allocation4]
    $region13: #{tpu_custom_call.1} parent=1 // pred_fallthru
      _
    // Predicated region
    $region14: #{tpu_custom_call.1} parent=1 // pred_check
      _
    $region15: #{tpu_custom_call.1} parent=1 // pred_check_branch
      %40 = sbr.rel (0) target = $region17
    $region16: #{tpu_custom_call.1} parent=1 // pred_region
      %41 = dma.done [#allocation4], 512
    $region17: #{tpu_custom_call.1} parent=1 // pred_fallthru
      _
    %42 = vsyncpa [#allocation3], 1
    %43 = vsyncpa [#allocation4], 1

</llo_original>
